<compile_context>
chip_gen: v6e
topology: v6e:2x2x1
jax: 0.10.0
libtpu: 0.0.40
codegen_flags: <defaults>
</compile_context>

<pallas_src>
import functools

import jax
import jax.numpy as jnp
from jax.experimental import pallas as pl
from jax.experimental.pallas import tpu as pltpu


def _round_up(x, m):
    return ((x + m - 1) // m) * m


_FUSE_VMEM_BUDGET = 36 * 1024 * 1024   # conservative: fits v7x 64 MiB physical VMEM
_VMEM_LIMIT_BYTES = 48 * 1024 * 1024   # scoped-VMEM limit for both pallas_calls
_TILE_TARGET_BYTES = 4 * 1024 * 1024   # per-stream HBM bytes per grid step (fallback)


# -----------------------------------------------------------------------------
# Fused single-pass kernel: one grid step per batch element, whole (C, S) row
# resident in VMEM.  mean -> FC -> ReLU -> FC -> sigmoid -> scale in one body.
# -----------------------------------------------------------------------------
def _se_fused_kernel(x_ref, w1t_ref, w2_ref, o_ref, *, inv_s):
    x = x_ref[0].astype(jnp.float32)                                  # (C, S)
    m = jnp.sum(x, axis=-1, keepdims=True) * inv_s                    # (C, 1) mean
    # h[j] = relu(sum_c W1[j,c] * m[c]) -> (1, Cr)   (VPU mul + XLU sublane reduce)
    h = jnp.maximum(jnp.sum(w1t_ref[...] * m, axis=0, keepdims=True), 0.0)
    # g[c] = sigmoid(sum_j W2[c,j] * h[j]) -> (C, 1) (VPU mul + XLU lane reduce)
    g = jax.nn.sigmoid(jnp.sum(w2_ref[...] * h, axis=-1, keepdims=True))
    o_ref[0] = (x * g).astype(o_ref.dtype)


# -----------------------------------------------------------------------------
# Two-pass fallback, pass 1: spatially tiled sum into a resident (1, C, 1)
# accumulator; gate computed at the last spatial tile.  Ragged last tile is
# masked in-kernel (no out-of-kernel padding).
# -----------------------------------------------------------------------------
def _se_gate_kernel(x_ref, w1t_ref, w2_ref, gate_ref, *, inv_s, s_total, ts):
    s = pl.program_id(1)

    @pl.when(s == 0)
    def _():
        gate_ref[...] = jnp.zeros_like(gate_ref)

    x = x_ref[0].astype(jnp.float32)                                  # (C, ts)
    if s_total % ts != 0:                                             # static check
        lane = jax.lax.broadcasted_iota(jnp.int32, x.shape, 1)
        x = jnp.where(lane + s * ts < s_total, x, 0.0)
    gate_ref[0] += jnp.sum(x, axis=-1, keepdims=True)

    @pl.when(s == pl.num_programs(1) - 1)
    def _():
        m = gate_ref[0] * inv_s
        h = jnp.maximum(jnp.sum(w1t_ref[...] * m, axis=0, keepdims=True), 0.0)
        g = jnp.sum(w2_ref[...] * h, axis=-1, keepdims=True)
        gate_ref[0] = jax.nn.sigmoid(g)


# Two-pass fallback, pass 2: lane-dense channel-wise rescale (OOB writes dropped).
def _se_scale_kernel(gate_ref, x_ref, o_ref):
    o_ref[0] = (x_ref[0].astype(jnp.float32) * gate_ref[0]).astype(o_ref.dtype)


def se_block(x, w1, w2, *, fuse_vmem_budget=_FUSE_VMEM_BUDGET, in_place=False):
    """SEblock forward.

    x : (N, C, D, H, W)
    w1: (C // r, C)   first Linear weight (bias=False)
    w2: (C, C // r)   second Linear weight (bias=False)
    """
    N, C, D, H, W = x.shape
    Cr = w1.shape[0]
    S = D * H * W
    itemsize = x.dtype.itemsize

    xr = x.reshape(N, C, S)            # contiguous reshape: no HBM copy
    w1t = jnp.transpose(w1)            # (C, Cr)

    w_blk = pl.BlockSpec((C, Cr), lambda *_: (0, 0))

    def _params(sem):
        return pltpu.CompilerParams(dimension_semantics=sem,
                                    vmem_limit_bytes=_VMEM_LIMIT_BYTES)

    # ---------------- fused single-pass path (2 HBM passes) -----------------
    # VMEM: in + out row double-buffered, plus conservative f32 compute temps.
    fused_vmem = 2 * 2 * C * S * itemsize + 2 * C * S * 4
    if fused_vmem <= fuse_vmem_budget:
        row_blk = pl.BlockSpec((1, C, S), lambda n: (n, 0, 0))
        out = pl.pallas_call(
            functools.partial(_se_fused_kernel, inv_s=1.0 / S),
            out_shape=jax.ShapeDtypeStruct((N, C, S), x.dtype),
            grid=(N,),
            in_specs=[row_blk, w_blk, w_blk],
            out_specs=row_blk,
            input_output_aliases={0: 0} if in_place else {},
            compiler_params=_params(("parallel",)),
        )(xr, w1t, w2)
        return out.reshape(N, C, D, H, W)

    # ---------------- two-pass fallback (3 HBM passes) -----------------------
    # Lane tile sized to move ~_TILE_TARGET_BYTES per input stream per grid step
    # (multiple of 128 for unmasked full-lane vst's).
    ts = max(128, (_TILE_TARGET_BYTES // (C * itemsize)) // 128 * 128)
    ts = min(ts, _round_up(S, 128))
    n_s = pl.cdiv(S, ts)

    x_blk = pl.BlockSpec((1, C, ts), lambda n, s: (n, 0, s))
    gate_blk = pl.BlockSpec((1, C, 1), lambda n, s: (n, 0, 0))

    # Pass 1: per-(n, c) spatial mean -> SE gate.
    gate = pl.pallas_call(
        functools.partial(_se_gate_kernel, inv_s=1.0 / S, s_total=S, ts=ts),
        out_shape=jax.ShapeDtypeStruct((N, C, 1), jnp.float32),
        grid=(N, n_s),
        in_specs=[x_blk, w_blk, w_blk],
        out_specs=gate_blk,
        compiler_params=_params(("parallel", "arbitrary")),
    )(xr, w1t, w2)

    # Pass 2: lane-dense channel-wise rescale of x by the gate.
    out = pl.pallas_call(
        _se_scale_kernel,
        out_shape=jax.ShapeDtypeStruct((N, C, S), x.dtype),
        grid=(N, n_s),
        in_specs=[gate_blk, x_blk],
        out_specs=x_blk,
        input_output_aliases={1: 0} if in_place else {},
        compiler_params=_params(("parallel", "parallel")),
    )(gate, xr)

    return out.reshape(N, C, D, H, W)


def _reference(x, w1, w2):
    """Pure-JAX reference mirroring the PyTorch SEblock forward (in f32)."""
    xf = x.astype(jnp.float32)
    y = jnp.mean(xf, axis=(2, 3, 4))                      # (N, C)   AdaptiveAvgPool3d(1)
    y = jnp.maximum(y @ w1.T, 0.0)                        # (N, Cr)  Linear + ReLU
    y = jax.nn.sigmoid(y @ w2.T)                          # (N, C)   Linear + Sigmoid
    return xf * y[:, :, None, None, None]


if __name__ == "__main__":
    N, C, reduction = 2, 64, 16
    Cr = C // reduction
    D, H, W = 3, 8, 10          # S = 240 (not a multiple of 128 -> exercises ragged tiles)

    key = jax.random.PRNGKey(0)
    k1, k2, k3 = jax.random.split(key, 3)

    x = jax.random.normal(k1, (N, C, D, H, W), dtype=jnp.float32)

    # PyTorch Linear default init: U(-1/sqrt(fan_in), 1/sqrt(fan_in)), bias=False.
    b1 = 1.0 / (C ** 0.5)
    b2 = 1.0 / (Cr ** 0.5)
    w1 = jax.random.uniform(k2, (Cr, C), jnp.float32, -b1, b1)
    w2 = jax.random.uniform(k3, (C, Cr), jnp.float32, -b2, b2)

    ref = jax.block_until_ready(_reference(x, w1, w2))
    assert ref.shape == (N, C, D, H, W)

    # 1) fused single-pass path (default)
    out_fused = jax.block_until_ready(se_block(x, w1, w2))
    assert out_fused.shape == ref.shape
    err = float(jnp.max(jnp.abs(out_fused - ref)))
    assert err < 1e-5, f"fused path error {err}"

    # 2) two-pass fallback path (forced, exercises in-kernel ragged-tile masking)
    out_2pass = jax.block_until_ready(se_block(x, w1, w2, fuse_vmem_budget=0))
    err = float(jnp.max(jnp.abs(out_2pass - ref)))
    assert err < 1e-5, f"two-pass path error {err}"

    # 3) bf16 end-to-end traffic (accumulation/gate stay f32 inside the kernel)
    x16 = x.astype(jnp.bfloat16)
    out_bf16 = jax.block_until_ready(se_block(x16, w1, w2))
    ref16 = _reference(x16, w1, w2)
    err = float(jnp.max(jnp.abs(out_bf16.astype(jnp.float32) - ref16)))
    assert err < 3e-2, f"bf16 path error {err}"

    print("KERNEL_OK")
</pallas_src>

<mosaic_0001>
module attributes {stable_mosaic.version = 11 : i64} {
  func.func @_se_fused_kernel(%arg0: i32, %arg1: memref<1x64x240xf32, #tpu.memory_space<vmem>>, %arg2: memref<64x4xf32, #tpu.memory_space<vmem>>, %arg3: memref<64x4xf32, #tpu.memory_space<vmem>>, %arg4: memref<1x64x240xf32, #tpu.memory_space<vmem>>) attributes {dimension_semantics = [#tpu.dimension_semantics<parallel>], iteration_bounds = array<i64: 2>, scalar_prefetch = 0 : i64, scratch_operands = 0 : i64, tpu.core_type = #tpu.core_type<tc>, window_params = [{transform_indices = @transform_0, window_bounds = array<i64: 1, 64, 240>}, {pipeline_mode = #tpu.pipeline_mode<synchronous>, transform_indices = @transform_1, window_bounds = array<i64: 64, 4>}, {pipeline_mode = #tpu.pipeline_mode<synchronous>, transform_indices = @transform_2, window_bounds = array<i64: 64, 4>}, {transform_indices = @transform_3, window_bounds = array<i64: 1, 64, 240>}]} {
    %c0 = arith.constant 0 : index
    %c0_0 = arith.constant 0 : index
    %c0_1 = arith.constant 0 : index
    %0 = vector.load %arg1[%c0, %c0_0, %c0_1] : memref<1x64x240xf32, #tpu.memory_space<vmem>>, vector<1x64x240xf32>
    %1 = vector.shape_cast %0 : vector<1x64x240xf32> to vector<64x240xf32>
    %cst = arith.constant dense<0.000000e+00> : vector<64xf32>
    %2 = vector.multi_reduction <add>, %1, %cst [1] : vector<64x240xf32> to vector<64xf32>
    %3 = vector.shape_cast %2 : vector<64xf32> to vector<64x1xf32>
    %cst_2 = arith.constant 0.00416666688 : f32
    %4 = vector.broadcast %cst_2 : f32 to vector<64x1xf32>
    %5 = arith.mulf %3, %4 : vector<64x1xf32>
    %c0_3 = arith.constant 0 : index
    %c0_4 = arith.constant 0 : index
    %6 = vector.load %arg2[%c0_3, %c0_4] : memref<64x4xf32, #tpu.memory_space<vmem>>, vector<64x4xf32>
    %7 = vector.broadcast %5 : vector<64x1xf32> to vector<64x4xf32>
    %8 = arith.mulf %6, %7 : vector<64x4xf32>
    %cst_5 = arith.constant dense<0.000000e+00> : vector<4xf32>
    %9 = vector.multi_reduction <add>, %8, %cst_5 [0] : vector<64x4xf32> to vector<4xf32>
    %10 = vector.shape_cast %9 : vector<4xf32> to vector<1x4xf32>
    %cst_6 = arith.constant 0.000000e+00 : f32
    %11 = vector.broadcast %cst_6 : f32 to vector<1x4xf32>
    %12 = arith.maximumf %10, %11 : vector<1x4xf32>
    %c0_7 = arith.constant 0 : index
    %c0_8 = arith.constant 0 : index
    %13 = vector.load %arg3[%c0_7, %c0_8] : memref<64x4xf32, #tpu.memory_space<vmem>>, vector<64x4xf32>
    %14 = vector.broadcast %12 : vector<1x4xf32> to vector<64x4xf32>
    %15 = arith.mulf %13, %14 : vector<64x4xf32>
    %cst_9 = arith.constant dense<0.000000e+00> : vector<64xf32>
    %16 = vector.multi_reduction <add>, %15, %cst_9 [1] : vector<64x4xf32> to vector<64xf32>
    %17 = vector.shape_cast %16 : vector<64xf32> to vector<64x1xf32>
    %18 = arith.negf %17 : vector<64x1xf32>
    %19 = math.exp %18 : vector<64x1xf32>
    %cst_10 = arith.constant 1.000000e+00 : f32
    %20 = vector.broadcast %cst_10 : f32 to vector<64x1xf32>
    %21 = arith.addf %20, %19 : vector<64x1xf32>
    %22 = arith.divf %20, %21 : vector<64x1xf32>
    %23 = vector.broadcast %22 : vector<64x1xf32> to vector<64x240xf32>
    %24 = arith.mulf %1, %23 : vector<64x240xf32>
    %c0_11 = arith.constant 0 : index
    %c0_12 = arith.constant 0 : index
    %c0_13 = arith.constant 0 : index
    %25 = vector.load %arg4[%c0_11, %c0_12, %c0_13] : memref<1x64x240xf32, #tpu.memory_space<vmem>>, vector<1x64x240xf32>
    %26 = vector.shape_cast %25 : vector<1x64x240xf32> to vector<64x240xf32>
    %27 = vector.shape_cast %24 : vector<64x240xf32> to vector<1x64x240xf32>
    tpu.vector_store %arg4[%c0_11, %c0_12, %c0_13], %27 {strides = array<i32>} : memref<1x64x240xf32, #tpu.memory_space<vmem>>, vector<1x64x240xf32>,
    return
  }
  func.func @transform_0(%arg0: i32) -> (i32, i32, i32) {
    %c0_i32 = arith.constant 0 : i32
    %c0_i32_0 = arith.constant 0 : i32
    %c0_i32_1 = arith.constant 0 : i32
    return %arg0, %c0_i32, %c0_i32_0 : i32, i32, i32
  }
  func.func @transform_1(%arg0: i32) -> (i32, i32) {
    %c0_i32 = arith.constant 0 : i32
    %c0_i32_0 = arith.constant 0 : i32
    %c0_i32_1 = arith.constant 0 : i32
    return %c0_i32, %c0_i32_0 : i32, i32
  }
  func.func @transform_2(%arg0: i32) -> (i32, i32) {
    %c0_i32 = arith.constant 0 : i32
    %c0_i32_0 = arith.constant 0 : i32
    %c0_i32_1 = arith.constant 0 : i32
    return %c0_i32, %c0_i32_0 : i32, i32
  }
  func.func @transform_3(%arg0: i32) -> (i32, i32, i32) {
    %c0_i32 = arith.constant 0 : i32
    %c0_i32_0 = arith.constant 0 : i32
    %c0_i32_1 = arith.constant 0 : i32
    return %arg0, %c0_i32, %c0_i32_0 : i32, i32, i32
  }
}

</mosaic_0001>

<llo_original>
// kernel: tpu_custom_call.1
$region0: #{tpu_custom_call.1}
  #allocation0 [shape = 'u32[]', space=smem, size = 0x4, offset = 0x4, fixed_abs, tag = 'smem constant byte address 0x4 - core index']
  #allocation1 [shape = 'u32[144,128]{1,0:T(1,128)}', space=vmem, size = 0x12000, scoped, tag = 'internal scratch']
  %s0 = inlined_call_operand.hbm [shape: f32[2,64,240], index: 0, kind: input, shape index: {}]
  %s1 = inlined_call_operand.vmem [shape: f32[64,4], index: 1, kind: input, shape index: {}]
  %s2 = inlined_call_operand.vmem [shape: f32[64,4], index: 2, kind: input, shape index: {}]
  %s3 = inlined_call_operand.hbm [shape: f32[2,64,240], index: 3, kind: output, shape index: {}]
  %s4 = sld [smem:[#allocation0]]
  $region49: #{tpu_custom_call.1} parent=0
    _
  %s6 = ssub.s32 1, %s4
  %s7 = scalar_select 0, %s6, %s4
  $region1: #{tpu_custom_call.1} parent=0
    #allocation2 [shape = 'u8[131072]{0}', space=vmem, size = 0x20000, scoped, tag = 'input window, operand 0']
    #allocation3 [shape = 's32[2]{0}', space=sflag, size = 0x8, scoped, tag = 'scoped memory for tpu_custom_call.1']
    #allocation4 [shape = 's32[2]{0}', space=sflag, size = 0x8, scoped, tag = 'scoped memory for tpu_custom_call.1']
    #allocation5 [shape = 'u8[131072]{0}', space=vmem, size = 0x20000, scoped, tag = 'output window, operand 0']
    %8 = vsyncpa [#allocation3], 0
    %s9 = scalar_lea.sflag [#allocation3], 1
    %10 = vsyncpa %s9, 0
    %11 = vsyncpa [#allocation4], 0
    %s12 = scalar_lea.sflag [#allocation4], 1
    %13 = vsyncpa %s12, 0
    loop: start=0, step=1, limit=4
    $region2: #{tpu_custom_call.1} parent=1 // loop_pre_header
      _
    $region3: #{tpu_custom_call.1} parent=1 // loop_header
      %s15 = sphi 0, %s19
      %p16 = scmp.ge.s32.totalorder %s15, 4
      %s25 = sphi 0, %s27
      %s28 = sphi 0, %s25
      %s29 = sphi 0, %s28
      %s45 = sphi 0, %s29
      %s49 = sphi 0, %s49
      %s51 = sphi 0, %s49
      %s52 = sphi 0, %s51
      %s66 = sphi 0, %s52
      %s70 = sphi 0, %s70
      %s72 = sphi 0, %s70
      %s73 = sphi 0, %s72
      %s87 = sphi 0, %s73
      %s93 = sphi 0, %s95
      %s96 = sphi 0, %s93
      %s97 = sphi 0, %s96
      %s113 = sphi 0, %s97
    $region4: #{tpu_custom_call.1} parent=1 // loop_header_branch
      %18 = sbr.rel (%p16) target = $region8
    $region5: #{tpu_custom_call.1} parent=1 // loop_body
      %s20 = ssub.s32 %s15, 1
      %s21 = ssub.s32 %s15, 2
      %s22 = sadd.s32 %s15, 1
      %s23 = ssub.s32 %s15, %s22
      %p24 = scmp.eq.s32.totalorder %s23, 0
      %s26 = sadd.s32 %s25, 1
      %s27 = scalar_select %p24, %s25, %s26
      %p30 = pneg %p24
      %p31 = scmp.eq.s32.totalorder %s15, 1
      %p32 = por %p30, %p31
      %p33 = scmp.ne.s32.totalorder %s25, %s28
      %p34 = scmp.eq.s32.totalorder %s15, 0
      %p35 = por %p33, %p34
      %p36 = scmp.ne.s32.totalorder %s25, %s28
      %p37 = scmp.eq.s32.totalorder %s20, 1
      %p38 = por %p36, %p37
      %p39 = scmp.ne.s32.totalorder %s28, %s29
      %p40 = scmp.eq.s32.totalorder %s20, 0
      %p41 = por %p39, %p40
      %p42 = scmp.ne.s32.totalorder %s28, %s29
      %p43 = scmp.eq.s32.totalorder %s21, 1
      %p44 = por %p42, %p43
      %p46 = scmp.ne.s32.totalorder %s29, %s45
      %p47 = scmp.eq.s32.totalorder %s21, 0
      %p48 = por %p46, %p47
      %s50 = sadd.s32 %s49, 1
      %p53 = scmp.eq.s32.totalorder %s15, 1
      %p54 = scmp.ne.s32.totalorder %s49, %s51
      %p55 = scmp.eq.s32.totalorder %s15, 0
      %p56 = por %p54, %p55
      %p57 = scmp.ne.s32.totalorder %s49, %s51
      %p58 = scmp.eq.s32.totalorder %s20, 1
      %p59 = por %p57, %p58
      %p60 = scmp.ne.s32.totalorder %s51, %s52
      %p61 = scmp.eq.s32.totalorder %s20, 0
      %p62 = por %p60, %p61
      %p63 = scmp.ne.s32.totalorder %s51, %s52
      %p64 = scmp.eq.s32.totalorder %s21, 1
      %p65 = por %p63, %p64
      %p67 = scmp.ne.s32.totalorder %s52, %s66
      %p68 = scmp.eq.s32.totalorder %s21, 0
      %p69 = por %p67, %p68
      %s71 = sadd.s32 %s70, 1
      %p74 = scmp.eq.s32.totalorder %s15, 1
      %p75 = scmp.ne.s32.totalorder %s70, %s72
      %p76 = scmp.eq.s32.totalorder %s15, 0
      %p77 = por %p75, %p76
      %p78 = scmp.ne.s32.totalorder %s70, %s72
      %p79 = scmp.eq.s32.totalorder %s20, 1
      %p80 = por %p78, %p79
      %p81 = scmp.ne.s32.totalorder %s72, %s73
      %p82 = scmp.eq.s32.totalorder %s20, 0
      %p83 = por %p81, %p82
      %p84 = scmp.ne.s32.totalorder %s72, %s73
      %p85 = scmp.eq.s32.totalorder %s21, 1
      %p86 = por %p84, %p85
      %p88 = scmp.ne.s32.totalorder %s73, %s87
      %p89 = scmp.eq.s32.totalorder %s21, 0
      %p90 = por %p88, %p89
      %s91 = ssub.s32 %s15, %s22
      %p92 = scmp.eq.s32.totalorder %s91, 0
      %s94 = sadd.s32 %s93, 1
      %s95 = scalar_select %p92, %s93, %s94
      %p98 = pneg %p92
      %p99 = scmp.eq.s32.totalorder %s15, 1
      %p100 = por %p98, %p99
      %p101 = scmp.ne.s32.totalorder %s93, %s96
      %p102 = scmp.eq.s32.totalorder %s15, 0
      %p103 = por %p101, %p102
      %p104 = scmp.ne.s32.totalorder %s93, %s96
      %p105 = scmp.eq.s32.totalorder %s20, 1
      %p106 = por %p104, %p105
      %p107 = scmp.ne.s32.totalorder %s96, %s97
      %p108 = scmp.eq.s32.totalorder %s20, 0
      %p109 = por %p107, %p108
      %p110 = scmp.ne.s32.totalorder %s96, %s97
      %p111 = scmp.eq.s32.totalorder %s21, 1
      %p112 = por %p110, %p111
      %p114 = scmp.ne.s32.totalorder %s97, %s113
      %p115 = scmp.eq.s32.totalorder %s21, 0
      %p116 = por %p114, %p115
      %p117 = scmp.le.s32.totalorder 1, %s15
      %p118 = scmp.lt.s32.totalorder %s15, 3
      %p119 = pnand %p117, %p118
      %p120 = pneg %p119
      // Predicated region
      $region9: #{tpu_custom_call.1} parent=5 // pred_check
        _
      $region10: #{tpu_custom_call.1} parent=5 // pred_check_branch
        %122 = sbr.rel (%p119) target = $region12
      $region11: #{tpu_custom_call.1} parent=5 // pred_region
        %s123 = ssub.s32 %s15, 1
        // Predicated region
        $region13: #{tpu_custom_call.1} parent=11 // pred_check
          %p124 = pneg %p62
        $region14: #{tpu_custom_call.1} parent=11 // pred_check_branch
          %126 = sbr.rel (%p124) target = $region16
        $region15: #{tpu_custom_call.1} parent=11 // pred_region
          _
        $region16: #{tpu_custom_call.1} parent=11 // pred_fallthru
          _
        // Predicated region
        $region17: #{tpu_custom_call.1} parent=11 // pred_check
          %p127 = pneg %p83
        $region18: #{tpu_custom_call.1} parent=11 // pred_check_branch
          %129 = sbr.rel (%p127) target = $region20
        $region19: #{tpu_custom_call.1} parent=11 // pred_region
          _
        $region20: #{tpu_custom_call.1} parent=11 // pred_fallthru
          _
      $region12: #{tpu_custom_call.1} parent=5 // pred_fallthru
        _
      %p130 = scmp.lt.s32.totalorder %s15, 2
      // Predicated region
      $region21: #{tpu_custom_call.1} parent=5 // pred_check
        %p131 = pneg %p130
      $region22: #{tpu_custom_call.1} parent=5 // pred_check_branch
        %133 = sbr.rel (%p131) target = $region24
      $region23: #{tpu_custom_call.1} parent=5 // pred_region
        // Predicated region
        $region25: #{tpu_custom_call.1} parent=23 // pred_check
          %p134 = pneg %p35
        $region26: #{tpu_custom_call.1} parent=23 // pred_check_branch
          %136 = sbr.rel (%p134) target = $region28
        $region27: #{tpu_custom_call.1} parent=23 // pred_region
          %s137 = sand.u32 %s25, 1
          %s138 = scalar_lea.sflag [#allocation3], %s137
          %s139 = sand.u32 %s25, 1
          %s140 = smul.addr %s139, 128
          %s141 = scalar_lea.vmem [#allocation2], %s140
          %s143 = ssub.s32 2048, 2048
          %144 = vsyncadd %s138, %s143
          %s145 = smul.addr %s15, 16
          %s146 = smul.addr %s145, 128
          %s147 = scalar_lea.hbm %s0, %s146
          %s148 = sshll.u32 %s141, 4
          %s149 = int_to_ptr.vmem [resolvable:$true] %s148
          %154 = dma.hbm_to_vmem [thread:$0]  %s147, 2048, %s149, %s138, 256, 256, 16
        $region28: #{tpu_custom_call.1} parent=23 // pred_fallthru
          _
      $region24: #{tpu_custom_call.1} parent=5 // pred_fallthru
        _
      %p155 = scmp.le.s32.totalorder 1, %s15
      %p156 = scmp.lt.s32.totalorder %s15, 3
      %p157 = pnand %p155, %p156
      %p158 = pneg %p157
      // Predicated region
      $region29: #{tpu_custom_call.1} parent=5 // pred_check
        _
      $region30: #{tpu_custom_call.1} parent=5 // pred_check_branch
        %160 = sbr.rel (%p157) target = $region32
      $region31: #{tpu_custom_call.1} parent=5 // pred_region
        %s161 = ssub.s32 %s15, 1
        %s162 = sand.u32 %s28, 1
        %s163 = scalar_lea.sflag [#allocation3], %s162
        %s164 = sand.u32 %s28, 1
        %s165 = smul.addr %s164, 128
        %s166 = scalar_lea.vmem [#allocation2], %s165
        // Predicated region
        $region33: #{tpu_custom_call.1} parent=31 // pred_check
          %p167 = pneg %p41
        $region34: #{tpu_custom_call.1} parent=31 // pred_check_branch
          %169 = sbr.rel (%p167) target = $region36
        $region35: #{tpu_custom_call.1} parent=31 // pred_region
          %170 = dma.done %s163, 2048
        $region36: #{tpu_custom_call.1} parent=31 // pred_fallthru
          _
        %s171 = sand.u32 %s28, 1
        %s172 = scalar_lea.sflag [#allocation3], %s171
        %s173 = sand.u32 %s28, 1
        %s174 = smul.addr %s173, 128
        %s175 = scalar_lea.vmem [#allocation2], %s174
        %p176 = pneg %p41
        %p177 = pneg %p38
        %p178 = pneg %p62
        %p179 = pneg %p59
        %p180 = pneg %p83
        %p181 = pneg %p80
        %p182 = pneg %p109
        %p183 = pneg %p106
        %s184 = sand.u32 %s96, 1
        %s185 = scalar_lea.sflag [#allocation4], %s184
        %s186 = sand.u32 %s96, 1
        %s187 = smul.addr %s186, 128
        %s188 = scalar_lea.vmem [#allocation5], %s187
        %v189 = vld [vmem:[%s166] sm:$0xff]
        %v190 = vld [vmem:[%s166 + $0x8] sm:$0xff]
        %v191 = vld [vmem:[%s166 + $0x10] sm:$0xff]
        %v192 = vld [vmem:[%s166 + $0x18] sm:$0xff]
        %v193 = vld [vmem:[%s166 + $0x20] sm:$0xff]
        %v194 = vld [vmem:[%s166 + $0x28] sm:$0xff]
        %v195 = vld [vmem:[%s166 + $0x30] sm:$0xff]
        %v196 = vld [vmem:[%s166 + $0x38] sm:$0xff]
        %v197 = vld [vmem:[%s166 + $0x40] sm:$0xff]
        %v198 = vld [vmem:[%s166 + $0x48] sm:$0xff]
        %v199 = vld [vmem:[%s166 + $0x50] sm:$0xff]
        %v200 = vld [vmem:[%s166 + $0x58] sm:$0xff]
        %v201 = vld [vmem:[%s166 + $0x60] sm:$0xff]
        %v202 = vld [vmem:[%s166 + $0x68] sm:$0xff]
        %v203 = vld [vmem:[%s166 + $0x70] sm:$0xff]
        %v204 = vld [vmem:[%s166 + $0x78] sm:$0xff]
        %vm205 = vcmask 916480
        %v206 = vsel %vm205, %v190, 0.0
        %v207 = vadd.f32 %v189, %v206
        %208 = vadd.xlane.f32.xlu0 %v207
        %v209 = vpop.xlane.xlu0 %208
        %v210 = vsel %vm205, %v192, 0.0
        %v211 = vadd.f32 %v191, %v210
        %212 = vadd.xlane.f32.xlu0 %v211
        %v213 = vpop.xlane.xlu0 %212
        %v214 = vsel %vm205, %v194, 0.0
        %v215 = vadd.f32 %v193, %v214
        %216 = vadd.xlane.f32.xlu0 %v215
        %v217 = vpop.xlane.xlu0 %216
        %v218 = vsel %vm205, %v196, 0.0
        %v219 = vadd.f32 %v195, %v218
        %220 = vadd.xlane.f32.xlu0 %v219
        %v221 = vpop.xlane.xlu0 %220
        %v222 = vsel %vm205, %v198, 0.0
        %v223 = vadd.f32 %v197, %v222
        %224 = vadd.xlane.f32.xlu0 %v223
        %v225 = vpop.xlane.xlu0 %224
        %v226 = vsel %vm205, %v200, 0.0
        %v227 = vadd.f32 %v199, %v226
        %228 = vadd.xlane.f32.xlu0 %v227
        %v229 = vpop.xlane.xlu0 %228
        %v230 = vsel %vm205, %v202, 0.0
        %v231 = vadd.f32 %v201, %v230
        %232 = vadd.xlane.f32.xlu0 %v231
        %v233 = vpop.xlane.xlu0 %232
        %v234 = vsel %vm205, %v204, 0.0
        %v235 = vadd.f32 %v203, %v234
        %236 = vadd.xlane.f32.xlu0 %v235
        %v237 = vpop.xlane.xlu0 %236
        %v238 = vmul.f32 %v209, 0.004166667
        %v239 = vmul.f32 %v213, 0.004166667
        %v240 = vmul.f32 %v217, 0.004166667
        %v241 = vmul.f32 %v221, 0.004166667
        %v242 = vmul.f32 %v225, 0.004166667
        %v243 = vmul.f32 %v229, 0.004166667
        %v244 = vmul.f32 %v233, 0.004166667
        %v245 = vmul.f32 %v237, 0.004166667
        %v246 = vld [vmem:[%s1] sm:$0xff]
        %v247 = vld [vmem:[%s1 + $0x8] sm:$0xff]
        %v248 = vld [vmem:[%s1 + $0x10] sm:$0xff]
        %v249 = vld [vmem:[%s1 + $0x18] sm:$0xff]
        %v250 = vld [vmem:[%s1 + $0x20] sm:$0xff]
        %v251 = vld [vmem:[%s1 + $0x28] sm:$0xff]
        %v252 = vld [vmem:[%s1 + $0x30] sm:$0xff]
        %v253 = vld [vmem:[%s1 + $0x38] sm:$0xff]
        %v254 = vmul.f32 %v246, %v238
        %v255 = vmul.f32 %v247, %v239
        %v256 = vmul.f32 %v248, %v240
        %v257 = vmul.f32 %v249, %v241
        %v258 = vmul.f32 %v250, %v242
        %v259 = vmul.f32 %v251, %v243
        %v260 = vmul.f32 %v252, %v244
        %v261 = vmul.f32 %v253, %v245
        %vm262 = vcmask 31744
        %v263 = vsel %vm262, %v254, 0.0
        %v264 = vsel %vm262, %v255, 0.0
        %v265 = vadd.f32 %v263, %v264
        %v266 = vsel %vm262, %v256, 0.0
        %v267 = vadd.f32 %v265, %v266
        %v268 = vsel %vm262, %v257, 0.0
        %v269 = vadd.f32 %v267, %v268
        %v270 = vsel %vm262, %v258, 0.0
        %v271 = vadd.f32 %v269, %v270
        %v272 = vsel %vm262, %v259, 0.0
        %v273 = vadd.f32 %v271, %v272
        %v274 = vsel %vm262, %v260, 0.0
        %v275 = vadd.f32 %v273, %v274
        %v276 = vsel %vm262, %v261, 0.0
        %v277 = vadd.f32 %v275, %v276
        %v278 = vrot.slane %v277, 4
        %v279 = vadd.f32 %v277, %v278
        %v280 = vrot.slane %v279, 2
        %v281 = vadd.f32 %v279, %v280
        %v282 = vrot.slane %v281, 1
        %v283 = vadd.f32 %v281, %v282
        %v284 = vmax.f32 %v283, 0.0
        %v285 = vld [vmem:[%s2] sm:$0xff]
        %v286 = vld [vmem:[%s2 + $0x8] sm:$0xff]
        %v287 = vld [vmem:[%s2 + $0x10] sm:$0xff]
        %v288 = vld [vmem:[%s2 + $0x18] sm:$0xff]
        %v289 = vld [vmem:[%s2 + $0x20] sm:$0xff]
        %v290 = vld [vmem:[%s2 + $0x28] sm:$0xff]
        %v291 = vld [vmem:[%s2 + $0x30] sm:$0xff]
        %v292 = vld [vmem:[%s2 + $0x38] sm:$0xff]
        %v293 = vmul.f32 %v285, %v284
        %v294 = vmul.f32 %v286, %v284
        %v295 = vmul.f32 %v287, %v284
        %v296 = vmul.f32 %v288, %v284
        %v297 = vmul.f32 %v289, %v284
        %v298 = vmul.f32 %v290, %v284
        %v299 = vmul.f32 %v291, %v284
        %v300 = vmul.f32 %v292, %v284
        %v301 = vsel %vm262, %v293, 0.0
        %302 = vadd.xlane.f32.xlu0 %v301
        %v303 = vpop.xlane.xlu0 %302
        %v304 = vsel %vm262, %v294, 0.0
        %305 = vadd.xlane.f32.xlu0 %v304
        %v306 = vpop.xlane.xlu0 %305
        %v307 = vsel %vm262, %v295, 0.0
        %308 = vadd.xlane.f32.xlu0 %v307
        %v309 = vpop.xlane.xlu0 %308
        %v310 = vsel %vm262, %v296, 0.0
        %311 = vadd.xlane.f32.xlu0 %v310
        %v312 = vpop.xlane.xlu0 %311
        %v313 = vsel %vm262, %v297, 0.0
        %314 = vadd.xlane.f32.xlu0 %v313
        %v315 = vpop.xlane.xlu0 %314
        %v316 = vsel %vm262, %v298, 0.0
        %317 = vadd.xlane.f32.xlu0 %v316
        %v318 = vpop.xlane.xlu0 %317
        %v319 = vsel %vm262, %v299, 0.0
        %320 = vadd.xlane.f32.xlu0 %v319
        %v321 = vpop.xlane.xlu0 %320
        %v322 = vsel %vm262, %v300, 0.0
        %323 = vadd.xlane.f32.xlu0 %v322
        %v324 = vpop.xlane.xlu0 %323
        %v325 = vxor.u32 %v303, 2147483648
        %v326 = vxor.u32 %v306, 2147483648
        %v327 = vxor.u32 %v309, 2147483648
        %v328 = vxor.u32 %v312, 2147483648
        %v329 = vxor.u32 %v315, 2147483648
        %v330 = vxor.u32 %v318, 2147483648
        %v331 = vxor.u32 %v321, 2147483648
        %v332 = vxor.u32 %v324, 2147483648
        %v333 = vmul.f32 %v325, 1.442695
        %v334 = vpow.pop %v333
        %v335 = vmul.f32 %v326, 1.442695
        %v336 = vpow.pop %v335
        %v337 = vmul.f32 %v327, 1.442695
        %v338 = vpow.pop %v337
        %v339 = vmul.f32 %v328, 1.442695
        %v340 = vpow.pop %v339
        %v341 = vmul.f32 %v329, 1.442695
        %v342 = vpow.pop %v341
        %v343 = vmul.f32 %v330, 1.442695
        %v344 = vpow.pop %v343
        %v345 = vmul.f32 %v331, 1.442695
        %v346 = vpow.pop %v345
        %v347 = vmul.f32 %v332, 1.442695
        %v348 = vpow.pop %v347
        %v349 = vadd.f32 %v334, 1.0
        %v350 = vadd.f32 %v336, 1.0
        %v351 = vadd.f32 %v338, 1.0
        %v352 = vadd.f32 %v340, 1.0
        %v353 = vadd.f32 %v342, 1.0
        %v354 = vadd.f32 %v344, 1.0
        %v355 = vadd.f32 %v346, 1.0
        %v356 = vadd.f32 %v348, 1.0
        %v357 = vrcp.pop %v349
        %v358 = vmul.f32 1.0, %v357
        %v359 = vrcp.pop %v350
        %v360 = vmul.f32 1.0, %v359
        %v361 = vrcp.pop %v351
        %v362 = vmul.f32 1.0, %v361
        %v363 = vrcp.pop %v352
        %v364 = vmul.f32 1.0, %v363
        %v365 = vrcp.pop %v353
        %v366 = vmul.f32 1.0, %v365
        %v367 = vrcp.pop %v354
        %v368 = vmul.f32 1.0, %v367
        %v369 = vrcp.pop %v355
        %v370 = vmul.f32 1.0, %v369
        %v371 = vrcp.pop %v356
        %v372 = vmul.f32 1.0, %v371
        %v373 = vmul.f32 %v189, %v358
        %v374 = vmul.f32 %v190, %v358
        %v375 = vmul.f32 %v191, %v360
        %v376 = vmul.f32 %v192, %v360
        %v377 = vmul.f32 %v193, %v362
        %v378 = vmul.f32 %v194, %v362
        %v379 = vmul.f32 %v195, %v364
        %v380 = vmul.f32 %v196, %v364
        %v381 = vmul.f32 %v197, %v366
        %v382 = vmul.f32 %v198, %v366
        %v383 = vmul.f32 %v199, %v368
        %v384 = vmul.f32 %v200, %v368
        %v385 = vmul.f32 %v201, %v370
        %v386 = vmul.f32 %v202, %v370
        %v387 = vmul.f32 %v203, %v372
        %v388 = vmul.f32 %v204, %v372
        %389 = vst [vmem:[%s188] sm:$0xff] %v373
        %390 = vst.msk [vmem:[%s188 + $0x8] sm:$0xff] %vm205, %v374
        %391 = vst [vmem:[%s188 + $0x10] sm:$0xff] %v375
        %392 = vst.msk [vmem:[%s188 + $0x18] sm:$0xff] %vm205, %v376
        %393 = vst [vmem:[%s188 + $0x20] sm:$0xff] %v377
        %394 = vst.msk [vmem:[%s188 + $0x28] sm:$0xff] %vm205, %v378
        %395 = vst [vmem:[%s188 + $0x30] sm:$0xff] %v379
        %396 = vst.msk [vmem:[%s188 + $0x38] sm:$0xff] %vm205, %v380
        %397 = vst [vmem:[%s188 + $0x40] sm:$0xff] %v381
        %398 = vst.msk [vmem:[%s188 + $0x48] sm:$0xff] %vm205, %v382
        %399 = vst [vmem:[%s188 + $0x50] sm:$0xff] %v383
        %400 = vst.msk [vmem:[%s188 + $0x58] sm:$0xff] %vm205, %v384
        %401 = vst [vmem:[%s188 + $0x60] sm:$0xff] %v385
        %402 = vst.msk [vmem:[%s188 + $0x68] sm:$0xff] %vm205, %v386
        %403 = vst [vmem:[%s188 + $0x70] sm:$0xff] %v387
        %404 = vst.msk [vmem:[%s188 + $0x78] sm:$0xff] %vm205, %v388
        %s405 = sand.u32 %s96, 1
        %s406 = scalar_lea.sflag [#allocation4], %s405
        %s407 = sand.u32 %s96, 1
        %s408 = smul.addr %s407, 128
        %s409 = scalar_lea.vmem [#allocation5], %s408
        // Predicated region
        $region37: #{tpu_custom_call.1} parent=31 // pred_check
          %p410 = pneg %p106
        $region38: #{tpu_custom_call.1} parent=31 // pred_check_branch
          %412 = sbr.rel (%p410) target = $region40
        $region39: #{tpu_custom_call.1} parent=31 // pred_region
          %s414 = ssub.s32 2048, 2048
          %415 = vsyncadd %s406, %s414
          %s416 = smul.addr %s20, 16
          %s417 = smul.addr %s416, 128
          %s418 = scalar_lea.hbm %s3, %s417
          %s419 = sshll.u32 %s409, 4
          %s420 = int_to_ptr.vmem [resolvable:$true] %s419
          %425 = dma.vmem_to_hbm [thread:$0]  %s420, 2048, %s418, %s406, 256, 256, 16
        $region40: #{tpu_custom_call.1} parent=31 // pred_fallthru
          _
      $region32: #{tpu_custom_call.1} parent=5 // pred_fallthru
        _
      %p426 = scmp.le.s32.totalorder 2, %s15
      // Predicated region
      $region41: #{tpu_custom_call.1} parent=5 // pred_check
        %p427 = pneg %p426
      $region42: #{tpu_custom_call.1} parent=5 // pred_check_branch
        %429 = sbr.rel (%p427) target = $region44
      $region43: #{tpu_custom_call.1} parent=5 // pred_region
        %s430 = ssub.s32 %s15, 2
        // Predicated region
        $region45: #{tpu_custom_call.1} parent=43 // pred_check
          %p431 = pneg %p112
        $region46: #{tpu_custom_call.1} parent=43 // pred_check_branch
          %433 = sbr.rel (%p431) target = $region48
        $region47: #{tpu_custom_call.1} parent=43 // pred_region
          %s434 = sand.u32 %s97, 1
          %s435 = scalar_lea.sflag [#allocation4], %s434
          %s436 = sand.u32 %s97, 1
          %s437 = smul.addr %s436, 128
          %s438 = scalar_lea.vmem [#allocation5], %s437
          %439 = dma.done %s435, 2048
        $region48: #{tpu_custom_call.1} parent=43 // pred_fallthru
          _
      $region44: #{tpu_custom_call.1} parent=5 // pred_fallthru
        _
    $region6: #{tpu_custom_call.1} parent=1 // loop_footer
      %s19 = sadd.s32 1, %s15
    $region7: #{tpu_custom_call.1} parent=1 // loop_footer_branch
      %14 = sbr.rel target = $region3
    $region8: #{tpu_custom_call.1} parent=1 // loop_exit
      _
    %440 = vsyncpa [#allocation3], 1
    %s441 = scalar_lea.sflag [#allocation3], 1
    %442 = vsyncpa %s441, 1
    %443 = vsyncpa [#allocation4], 1
    %s444 = scalar_lea.sflag [#allocation4], 1
    %445 = vsyncpa %s444, 1

</llo_original>
